<compile_context>
chip_gen: v6e
topology: v6e:2x2x1
jax: 0.10.0
libtpu: 0.0.40
codegen_flags: <defaults>
</compile_context>

<pallas_src>
import functools

import jax
import jax.numpy as jnp
from jax.experimental import pallas as pl
from jax.experimental.pallas import tpu as pltpu


LANE = 128


def _round_up(n, m=LANE):
    return ((n + m - 1) // m) * m


# ----------------------------------------------------------------------------
# Fused kernel (runs entirely per grid step; no scratch, no pl.when):
#   conv-as-im2col-matmul (+folded bias) -> swish -> global average pool
#   -> embedding head (Linear + swish) -> classifier Linear
# ----------------------------------------------------------------------------
def fused_kernel(x_ref, wc_ref, w1_ref, b1_ref, w2_ref, b2_ref,
                 emb_ref, logit_ref, *, bt, hw):
    # x_ref  : (bt, hw, kk1)  im2col patches for this batch tile (+ ones col)
    # wc_ref : (kk1, C1p)     flattened conv weight, last row = conv bias
    # w1_ref : (C1p, Dp)      embedding head weight, 1/hw pool scale folded in
    # b1_ref : (1, Dp)
    # w2_ref : (Dp, NCp)      classifier weight
    # b2_ref : (1, NCp)
    # emb_ref   : (bt, Dp)    output block for this batch tile
    # logit_ref : (bt, NCp)   output block for this batch tile
    kk1 = x_ref.shape[-1]
    c1p = wc_ref.shape[-1]

    # --- 3x3 "same" conv (+bias) as ONE im2col matmul on the MXU ------------
    p = x_ref[...].reshape(bt * hw, kk1)                       # (bt*hw, kk1)
    acc = jnp.dot(p, wc_ref[...], preferred_element_type=jnp.float32)
    act = acc * jax.nn.sigmoid(acc)                            # swish (VPU/EUP)

    # --- global average pool (the 1/hw scale lives inside w1) ---------------
    pooled = jnp.sum(act.reshape(bt, hw, c1p), axis=1)         # (bt, c1p)

    # --- embedding head + classifier, per step (tiny, rides on idle MXU) ----
    h = (jnp.dot(pooled, w1_ref[...], preferred_element_type=jnp.float32)
         + b1_ref[...])
    emb = h * jax.nn.sigmoid(h)                                # swish
    emb_ref[...] = emb.astype(emb_ref.dtype)
    logit_ref[...] = (
        jnp.dot(emb, w2_ref[...], preferred_element_type=jnp.float32)
        + b2_ref[...]).astype(logit_ref.dtype)


# ----------------------------------------------------------------------------
# Wrapper
# ----------------------------------------------------------------------------
def clr_cls_forward(x_nchw, params):
    """Returns (embedding, projection) like CLR_CLS.forward."""
    w_conv, b_conv, w_head, b_head, w_cls, b_cls = params
    B, Cin, H, W = x_nchw.shape
    KH, KW, _, C1 = w_conv.shape
    D = w_head.shape[1]
    NC = w_cls.shape[1]

    C1p, Dp, NCp = _round_up(C1), _round_up(D), _round_up(NC)
    HW = H * W
    KK = KH * KW * Cin
    KK1 = KK + 1                       # + constant-1 column carrying the bias

    # --- layout plumbing in plain JAX (one-time, tiny) -----------------------
    # NCHW -> NHWC, pad spatially, im2col to (B, H*W, KH*KW*Cin), append ones.
    x = jnp.transpose(x_nchw, (0, 2, 3, 1)).astype(jnp.float32)
    x_pad = jnp.pad(x, ((0, 0), (KH // 2, KH // 2), (KW // 2, KW // 2), (0, 0)))
    taps = [x_pad[:, kh:kh + H, kw:kw + W, :]
            for kh in range(KH) for kw in range(KW)]
    patches = jnp.concatenate(taps, axis=-1).reshape(B, HW, KK)
    patches = jnp.concatenate(
        [patches, jnp.ones((B, HW, 1), patches.dtype)], axis=-1)   # (B, HW, KK1)

    # Weights: lane-pad to 128 (numerically exact zero padding); fold the conv
    # bias into the last weight row and the 1/HW pooling scale into w1.
    wc = jnp.concatenate([w_conv.reshape(KK, C1), b_conv.reshape(1, C1)], axis=0)
    wc_p = jnp.pad(wc, ((0, 0), (0, C1p - C1)))                     # (KK1, C1p)
    w1_p = jnp.pad(w_head * (1.0 / HW), ((0, C1p - C1), (0, Dp - D)))
    b1_p = jnp.pad(b_head.reshape(1, D), ((0, 0), (0, Dp - D)))
    w2_p = jnp.pad(w_cls, ((0, Dp - D), (0, NCp - NC)))
    b2_p = jnp.pad(b_cls.reshape(1, NC), ((0, 0), (0, NCp - NC)))

    # Batch tile: all images in one step for small B (the kernel is otherwise
    # per-step-overhead bound); cap at 8 so output blocks stay sublane-dense.
    bt = B if B < 8 else 8
    assert B % bt == 0
    grid = (B // bt,)

    flops = (2 * B * HW * KK1 * C1p) + (2 * B * C1p * Dp) + (2 * B * Dp * NCp)
    transcendentals = B * HW * C1p + B * Dp
    bytes_accessed = 4 * (patches.size + wc_p.size + w1_p.size + b1_p.size
                          + w2_p.size + b2_p.size + B * Dp + B * NCp)

    emb_p, logit_p = pl.pallas_call(
        functools.partial(fused_kernel, bt=bt, hw=HW),
        out_shape=(
            jax.ShapeDtypeStruct((B, Dp), jnp.float32),
            jax.ShapeDtypeStruct((B, NCp), jnp.float32),
        ),
        grid=grid,
        in_specs=[
            pl.BlockSpec((bt, HW, KK1), lambda b: (b, 0, 0)),
            pl.BlockSpec((KK1, C1p), lambda b: (0, 0)),
            pl.BlockSpec((C1p, Dp), lambda b: (0, 0)),
            pl.BlockSpec((1, Dp), lambda b: (0, 0)),
            pl.BlockSpec((Dp, NCp), lambda b: (0, 0)),
            pl.BlockSpec((1, NCp), lambda b: (0, 0)),
        ],
        out_specs=(
            pl.BlockSpec((bt, Dp), lambda b: (b, 0)),
            pl.BlockSpec((bt, NCp), lambda b: (b, 0)),
        ),
        compiler_params=pltpu.CompilerParams(
            dimension_semantics=("parallel",)),      # batch steps are independent
        cost_estimate=pl.CostEstimate(
            flops=flops, transcendentals=transcendentals,
            bytes_accessed=bytes_accessed),
    )(patches, wc_p, w1_p, b1_p, w2_p, b2_p)

    return emb_p[:, :D], logit_p[:, :NC]


# ----------------------------------------------------------------------------
# Pure-JAX reference (full f32 precision) and parameter init
# ----------------------------------------------------------------------------
def reference_forward(x_nchw, params):
    w_conv, b_conv, w_head, b_head, w_cls, b_cls = params
    x = jnp.transpose(x_nchw, (0, 2, 3, 1)).astype(jnp.float32)
    y = jax.lax.conv_general_dilated(
        x, w_conv, (1, 1), "SAME",
        dimension_numbers=("NHWC", "HWIO", "NHWC"),
        precision=jax.lax.Precision.HIGHEST)
    y = y + b_conv
    y = y * jax.nn.sigmoid(y)
    pooled = jnp.mean(y, axis=(1, 2))
    h = jnp.dot(pooled, w_head, precision=jax.lax.Precision.HIGHEST) + b_head
    emb = h * jax.nn.sigmoid(h)
    logits = jnp.dot(emb, w_cls, precision=jax.lax.Precision.HIGHEST) + b_cls
    return emb, logits


def init_params(key, Cin=1, C1=16, D=32, n_classes=8, KH=3, KW=3):
    k1, k2, k3, k4 = jax.random.split(key, 4)
    w_conv = 0.5 * jax.random.normal(k1, (KH, KW, Cin, C1), jnp.float32)
    b_conv = jnp.zeros((C1,), jnp.float32)
    w_head = 0.3 * jax.random.normal(k2, (C1, D), jnp.float32)
    b_head = 0.1 * jax.random.normal(k3, (D,), jnp.float32)
    w_cls = 0.3 * jax.random.normal(k4, (D, n_classes), jnp.float32)
    b_cls = jnp.zeros((n_classes,), jnp.float32)
    return (w_conv, b_conv, w_head, b_head, w_cls, b_cls)


if __name__ == "__main__":
    key = jax.random.PRNGKey(0)
    k_x, k_p = jax.random.split(key)

    # EfficientNet-b0 here was built with in_channels=1 -> input (B, 1, H, W).
    B, Cin, H, W = 2, 1, 16, 16
    n_classes = 8
    x = jax.random.normal(k_x, (B, Cin, H, W), jnp.float32)
    params = init_params(k_p, Cin=Cin, C1=16, D=32, n_classes=n_classes)

    embedding, projection = jax.jit(clr_cls_forward)(x, params)
    jax.block_until_ready((embedding, projection))

    assert embedding.shape == (B, 32)
    assert projection.shape == (B, n_classes)

    # All-f32 path: tolerance tightened vs. the previous version (was 5e-2);
    # a small margin is kept for MXU f32 multi-pass rounding differences.
    emb_ref, proj_ref = reference_forward(x, params)
    assert jnp.allclose(embedding, emb_ref, rtol=5e-3, atol=5e-3)
    assert jnp.allclose(projection, proj_ref, rtol=5e-3, atol=5e-3)
    print("KERNEL_OK")
</pallas_src>

<mosaic_0001>
module attributes {stable_mosaic.version = 11 : i64} {
  func.func @fused_kernel(%arg0: i32, %arg1: memref<2x256x10xf32, #tpu.memory_space<vmem>>, %arg2: memref<10x128xf32, #tpu.memory_space<vmem>>, %arg3: memref<128x128xf32, #tpu.memory_space<vmem>>, %arg4: memref<1x128xf32, #tpu.memory_space<vmem>>, %arg5: memref<128x128xf32, #tpu.memory_space<vmem>>, %arg6: memref<1x128xf32, #tpu.memory_space<vmem>>, %arg7: memref<2x128xf32, #tpu.memory_space<vmem>>, %arg8: memref<2x128xf32, #tpu.memory_space<vmem>>) attributes {dimension_semantics = [#tpu.dimension_semantics<parallel>], iteration_bounds = array<i64: 1>, scalar_prefetch = 0 : i64, scratch_operands = 0 : i64, tpu.core_type = #tpu.core_type<tc>, window_params = [{transform_indices = @transform_0, window_bounds = array<i64: 2, 256, 10>}, {pipeline_mode = #tpu.pipeline_mode<synchronous>, transform_indices = @transform_1, window_bounds = array<i64: 10, 128>}, {pipeline_mode = #tpu.pipeline_mode<synchronous>, transform_indices = @transform_2, window_bounds = array<i64: 128, 128>}, {pipeline_mode = #tpu.pipeline_mode<synchronous>, transform_indices = @transform_3, window_bounds = array<i64: 1, 128>}, {pipeline_mode = #tpu.pipeline_mode<synchronous>, transform_indices = @transform_4, window_bounds = array<i64: 128, 128>}, {pipeline_mode = #tpu.pipeline_mode<synchronous>, transform_indices = @transform_5, window_bounds = array<i64: 1, 128>}, {transform_indices = @transform_6, window_bounds = array<i64: 2, 128>}, {transform_indices = @transform_7, window_bounds = array<i64: 2, 128>}]} {
    %c0 = arith.constant 0 : index
    %c0_0 = arith.constant 0 : index
    %c0_1 = arith.constant 0 : index
    %0 = vector.load %arg1[%c0, %c0_0, %c0_1] : memref<2x256x10xf32, #tpu.memory_space<vmem>>, vector<2x256x10xf32>
    %1 = vector.shape_cast %0 : vector<2x256x10xf32> to vector<512x10xf32>
    %c0_2 = arith.constant 0 : index
    %c0_3 = arith.constant 0 : index
    %2 = vector.load %arg2[%c0_2, %c0_3] : memref<10x128xf32, #tpu.memory_space<vmem>>, vector<10x128xf32>
    %cst = arith.constant dense<0.000000e+00> : vector<512x128xf32>
    %3 = tpu.matmul %1, %2, %cst {dimension_numbers = #tpu.dot_dimension_numbers<[1], [0], [0], [1], [0, 0, 1, 1], [], []>} : vector<512x10xf32>, vector<10x128xf32>, vector<512x128xf32> -> vector<512x128xf32>
    %4 = arith.negf %3 : vector<512x128xf32>
    %5 = math.exp %4 : vector<512x128xf32>
    %cst_4 = arith.constant 1.000000e+00 : f32
    %6 = vector.broadcast %cst_4 : f32 to vector<512x128xf32>
    %7 = arith.addf %6, %5 : vector<512x128xf32>
    %8 = arith.divf %6, %7 : vector<512x128xf32>
    %9 = arith.mulf %3, %8 : vector<512x128xf32>
    %10 = vector.shape_cast %9 : vector<512x128xf32> to vector<2x256x128xf32>
    %cst_5 = arith.constant dense<0.000000e+00> : vector<2x128xf32>
    %11 = vector.multi_reduction <add>, %10, %cst_5 [1] : vector<2x256x128xf32> to vector<2x128xf32>
    %c0_6 = arith.constant 0 : index
    %c0_7 = arith.constant 0 : index
    %12 = vector.load %arg3[%c0_6, %c0_7] : memref<128x128xf32, #tpu.memory_space<vmem>>, vector<128x128xf32>
    %cst_8 = arith.constant dense<0.000000e+00> : vector<2x128xf32>
    %13 = tpu.matmul %11, %12, %cst_8 {dimension_numbers = #tpu.dot_dimension_numbers<[1], [0], [0], [1], [0, 0, 1, 1], [], []>} : vector<2x128xf32>, vector<128x128xf32>, vector<2x128xf32> -> vector<2x128xf32>
    %c0_9 = arith.constant 0 : index
    %c0_10 = arith.constant 0 : index
    %14 = vector.load %arg4[%c0_9, %c0_10] : memref<1x128xf32, #tpu.memory_space<vmem>>, vector<1x128xf32>
    %15 = vector.broadcast %14 : vector<1x128xf32> to vector<2x128xf32>
    %16 = arith.addf %13, %15 : vector<2x128xf32>
    %17 = arith.negf %16 : vector<2x128xf32>
    %18 = math.exp %17 : vector<2x128xf32>
    %cst_11 = arith.constant 1.000000e+00 : f32
    %19 = vector.broadcast %cst_11 : f32 to vector<2x128xf32>
    %20 = arith.addf %19, %18 : vector<2x128xf32>
    %21 = arith.divf %19, %20 : vector<2x128xf32>
    %22 = arith.mulf %16, %21 : vector<2x128xf32>
    %c0_12 = arith.constant 0 : index
    %c0_13 = arith.constant 0 : index
    %23 = vector.load %arg7[%c0_12, %c0_13] : memref<2x128xf32, #tpu.memory_space<vmem>>, vector<2x128xf32>
    tpu.vector_store %arg7[%c0_12, %c0_13], %22 {strides = array<i32>} : memref<2x128xf32, #tpu.memory_space<vmem>>, vector<2x128xf32>,
    %c0_14 = arith.constant 0 : index
    %c0_15 = arith.constant 0 : index
    %24 = vector.load %arg5[%c0_14, %c0_15] : memref<128x128xf32, #tpu.memory_space<vmem>>, vector<128x128xf32>
    %cst_16 = arith.constant dense<0.000000e+00> : vector<2x128xf32>
    %25 = tpu.matmul %22, %24, %cst_16 {dimension_numbers = #tpu.dot_dimension_numbers<[1], [0], [0], [1], [0, 0, 1, 1], [], []>} : vector<2x128xf32>, vector<128x128xf32>, vector<2x128xf32> -> vector<2x128xf32>
    %c0_17 = arith.constant 0 : index
    %c0_18 = arith.constant 0 : index
    %26 = vector.load %arg6[%c0_17, %c0_18] : memref<1x128xf32, #tpu.memory_space<vmem>>, vector<1x128xf32>
    %27 = vector.broadcast %26 : vector<1x128xf32> to vector<2x128xf32>
    %28 = arith.addf %25, %27 : vector<2x128xf32>
    %c0_19 = arith.constant 0 : index
    %c0_20 = arith.constant 0 : index
    %29 = vector.load %arg8[%c0_19, %c0_20] : memref<2x128xf32, #tpu.memory_space<vmem>>, vector<2x128xf32>
    tpu.vector_store %arg8[%c0_19, %c0_20], %28 {strides = array<i32>} : memref<2x128xf32, #tpu.memory_space<vmem>>, vector<2x128xf32>,
    return
  }
  func.func @transform_0(%arg0: i32) -> (i32, i32, i32) {
    %c0_i32 = arith.constant 0 : i32
    %c0_i32_0 = arith.constant 0 : i32
    %c0_i32_1 = arith.constant 0 : i32
    return %arg0, %c0_i32, %c0_i32_0 : i32, i32, i32
  }
  func.func @transform_1(%arg0: i32) -> (i32, i32) {
    %c0_i32 = arith.constant 0 : i32
    %c0_i32_0 = arith.constant 0 : i32
    %c0_i32_1 = arith.constant 0 : i32
    return %c0_i32, %c0_i32_0 : i32, i32
  }
  func.func @transform_2(%arg0: i32) -> (i32, i32) {
    %c0_i32 = arith.constant 0 : i32
    %c0_i32_0 = arith.constant 0 : i32
    %c0_i32_1 = arith.constant 0 : i32
    return %c0_i32, %c0_i32_0 : i32, i32
  }
  func.func @transform_3(%arg0: i32) -> (i32, i32) {
    %c0_i32 = arith.constant 0 : i32
    %c0_i32_0 = arith.constant 0 : i32
    %c0_i32_1 = arith.constant 0 : i32
    return %c0_i32, %c0_i32_0 : i32, i32
  }
  func.func @transform_4(%arg0: i32) -> (i32, i32) {
    %c0_i32 = arith.constant 0 : i32
    %c0_i32_0 = arith.constant 0 : i32
    %c0_i32_1 = arith.constant 0 : i32
    return %c0_i32, %c0_i32_0 : i32, i32
  }
  func.func @transform_5(%arg0: i32) -> (i32, i32) {
    %c0_i32 = arith.constant 0 : i32
    %c0_i32_0 = arith.constant 0 : i32
    %c0_i32_1 = arith.constant 0 : i32
    return %c0_i32, %c0_i32_0 : i32, i32
  }
  func.func @transform_6(%arg0: i32) -> (i32, i32) {
    %c0_i32 = arith.constant 0 : i32
    %c0_i32_0 = arith.constant 0 : i32
    return %arg0, %c0_i32 : i32, i32
  }
  func.func @transform_7(%arg0: i32) -> (i32, i32) {
    %c0_i32 = arith.constant 0 : i32
    %c0_i32_0 = arith.constant 0 : i32
    return %arg0, %c0_i32 : i32, i32
  }
}

</mosaic_0001>

<llo_original>
// kernel: clr_cls_forward.1
$region0: #{clr_cls_forward.1}
  #allocation0 [shape = 'u32[]', space=smem, size = 0x4, offset = 0x4, fixed_abs, tag = 'smem constant byte address 0x4 - core index']
  #allocation1 [shape = 'u32[144,128]{1,0:T(1,128)}', space=vmem, size = 0x12000, scoped, tag = 'internal scratch']
  %s0 = inlined_call_operand.vmem [shape: f32[2,256,10], index: 0, kind: input, shape index: {}]
  %s1 = inlined_call_operand.vmem [shape: f32[10,128], index: 1, kind: input, shape index: {}]
  %s2 = inlined_call_operand.vmem [shape: f32[128,128], index: 2, kind: input, shape index: {}]
  %s3 = inlined_call_operand.vmem [shape: f32[1,128], index: 3, kind: input, shape index: {}]
  %s4 = inlined_call_operand.vmem [shape: f32[128,128], index: 4, kind: input, shape index: {}]
  %s5 = inlined_call_operand.vmem [shape: f32[1,128], index: 5, kind: input, shape index: {}]
  %s6 = inlined_call_operand.hbm [shape: f32[2,128], index: 6, kind: output, shape index: {0}]
  %s7 = inlined_call_operand.hbm [shape: f32[2,128], index: 7, kind: output, shape index: {1}]
  %8 = xla_tuple %s6, %s7
  %s9 = sld [smem:[#allocation0]]
  $region42: #{clr_cls_forward.1} parent=0
    _
  %s11 = ssub.s32 1, %s9
  %s12 = scalar_select 0, %s11, %s9
  $region1: #{clr_cls_forward.1} parent=0
    #allocation2 [shape = 'u8[1024]{0}', space=vmem, size = 0x400, scoped, tag = 'output window, operand 0, single buffered']
    #allocation3 [shape = 's32[1]{0}', space=sflag, size = 0x4, scoped, tag = 'scoped memory for clr_cls_forward.1']
    #allocation4 [shape = 'u8[1024]{0}', space=vmem, size = 0x400, scoped, tag = 'output window, operand 1, single buffered']
    #allocation5 [shape = 's32[1]{0}', space=sflag, size = 0x4, scoped, tag = 'scoped memory for clr_cls_forward.1']
    %13 = vsyncpa [#allocation3], 0
    %14 = vsyncpa [#allocation5], 0
    // Predicated region
    $region2: #{clr_cls_forward.1} parent=1 // pred_check
      _
    $region3: #{clr_cls_forward.1} parent=1 // pred_check_branch
      %16 = sbr.rel (0) target = $region5
    $region4: #{clr_cls_forward.1} parent=1 // pred_region
      _
    $region5: #{clr_cls_forward.1} parent=1 // pred_fallthru
      _
    // Predicated region
    $region6: #{clr_cls_forward.1} parent=1 // pred_check
      _
    $region7: #{clr_cls_forward.1} parent=1 // pred_check_branch
      %18 = sbr.rel (0) target = $region9
    $region8: #{clr_cls_forward.1} parent=1 // pred_region
      _
    $region9: #{clr_cls_forward.1} parent=1 // pred_fallthru
      _
    // Predicated region
    $region10: #{clr_cls_forward.1} parent=1 // pred_check
      _
    $region11: #{clr_cls_forward.1} parent=1 // pred_check_branch
      %20 = sbr.rel (0) target = $region13
    $region12: #{clr_cls_forward.1} parent=1 // pred_region
      _
    $region13: #{clr_cls_forward.1} parent=1 // pred_fallthru
      _
    // Predicated region
    $region14: #{clr_cls_forward.1} parent=1 // pred_check
      _
    $region15: #{clr_cls_forward.1} parent=1 // pred_check_branch
      %22 = sbr.rel (0) target = $region17
    $region16: #{clr_cls_forward.1} parent=1 // pred_region
      _
    $region17: #{clr_cls_forward.1} parent=1 // pred_fallthru
      _
    // Predicated region
    $region18: #{clr_cls_forward.1} parent=1 // pred_check
      _
    $region19: #{clr_cls_forward.1} parent=1 // pred_check_branch
      %24 = sbr.rel (0) target = $region21
    $region20: #{clr_cls_forward.1} parent=1 // pred_region
      _
    $region21: #{clr_cls_forward.1} parent=1 // pred_fallthru
      _
    // Predicated region
    $region22: #{clr_cls_forward.1} parent=1 // pred_check
      _
    $region23: #{clr_cls_forward.1} parent=1 // pred_check_branch
      %26 = sbr.rel (0) target = $region25
    $region24: #{clr_cls_forward.1} parent=1 // pred_region
      _
    $region25: #{clr_cls_forward.1} parent=1 // pred_fallthru
      _
    %v27 = vld [vmem:[%s0] sm:$0xff]
    %v28 = vld [vmem:[%s0 + $0x8] sm:$0xff]
    %v29 = vld [vmem:[%s0 + $0x10] sm:$0xff]
    %v30 = vld [vmem:[%s0 + $0x18] sm:$0xff]
    %v31 = vld [vmem:[%s0 + $0x20] sm:$0xff]
    %v32 = vld [vmem:[%s0 + $0x28] sm:$0xff]
    %v33 = vld [vmem:[%s0 + $0x30] sm:$0xff]
    %v34 = vld [vmem:[%s0 + $0x38] sm:$0xff]
    %v35 = vld [vmem:[%s0 + $0x40] sm:$0xff]
    %v36 = vld [vmem:[%s0 + $0x48] sm:$0xff]
    %v37 = vld [vmem:[%s0 + $0x50] sm:$0xff]
    %v38 = vld [vmem:[%s0 + $0x58] sm:$0xff]
    %v39 = vld [vmem:[%s0 + $0x60] sm:$0xff]
    %v40 = vld [vmem:[%s0 + $0x68] sm:$0xff]
    %v41 = vld [vmem:[%s0 + $0x70] sm:$0xff]
    %v42 = vld [vmem:[%s0 + $0x78] sm:$0xff]
    %v43 = vld [vmem:[%s0 + $0x80] sm:$0xff]
    %v44 = vld [vmem:[%s0 + $0x88] sm:$0xff]
    %v45 = vld [vmem:[%s0 + $0x90] sm:$0xff]
    %v46 = vld [vmem:[%s0 + $0x98] sm:$0xff]
    %v47 = vld [vmem:[%s0 + $0xa0] sm:$0xff]
    %v48 = vld [vmem:[%s0 + $0xa8] sm:$0xff]
    %v49 = vld [vmem:[%s0 + $0xb0] sm:$0xff]
    %v50 = vld [vmem:[%s0 + $0xb8] sm:$0xff]
    %v51 = vld [vmem:[%s0 + $0xc0] sm:$0xff]
    %v52 = vld [vmem:[%s0 + $0xc8] sm:$0xff]
    %v53 = vld [vmem:[%s0 + $0xd0] sm:$0xff]
    %v54 = vld [vmem:[%s0 + $0xd8] sm:$0xff]
    %v55 = vld [vmem:[%s0 + $0xe0] sm:$0xff]
    %v56 = vld [vmem:[%s0 + $0xe8] sm:$0xff]
    %v57 = vld [vmem:[%s0 + $0xf0] sm:$0xff]
    %v58 = vld [vmem:[%s0 + $0xf8] sm:$0xff]
    %v59 = vld [vmem:[%s0 + $0x100] sm:$0xff]
    %v60 = vld [vmem:[%s0 + $0x108] sm:$0xff]
    %v61 = vld [vmem:[%s0 + $0x110] sm:$0xff]
    %v62 = vld [vmem:[%s0 + $0x118] sm:$0xff]
    %v63 = vld [vmem:[%s0 + $0x120] sm:$0xff]
    %v64 = vld [vmem:[%s0 + $0x128] sm:$0xff]
    %v65 = vld [vmem:[%s0 + $0x130] sm:$0xff]
    %v66 = vld [vmem:[%s0 + $0x138] sm:$0xff]
    %v67 = vld [vmem:[%s0 + $0x140] sm:$0xff]
    %v68 = vld [vmem:[%s0 + $0x148] sm:$0xff]
    %v69 = vld [vmem:[%s0 + $0x150] sm:$0xff]
    %v70 = vld [vmem:[%s0 + $0x158] sm:$0xff]
    %v71 = vld [vmem:[%s0 + $0x160] sm:$0xff]
    %v72 = vld [vmem:[%s0 + $0x168] sm:$0xff]
    %v73 = vld [vmem:[%s0 + $0x170] sm:$0xff]
    %v74 = vld [vmem:[%s0 + $0x178] sm:$0xff]
    %v75 = vld [vmem:[%s0 + $0x180] sm:$0xff]
    %v76 = vld [vmem:[%s0 + $0x188] sm:$0xff]
    %v77 = vld [vmem:[%s0 + $0x190] sm:$0xff]
    %v78 = vld [vmem:[%s0 + $0x198] sm:$0xff]
    %v79 = vld [vmem:[%s0 + $0x1a0] sm:$0xff]
    %v80 = vld [vmem:[%s0 + $0x1a8] sm:$0xff]
    %v81 = vld [vmem:[%s0 + $0x1b0] sm:$0xff]
    %v82 = vld [vmem:[%s0 + $0x1b8] sm:$0xff]
    %v83 = vld [vmem:[%s0 + $0x1c0] sm:$0xff]
    %v84 = vld [vmem:[%s0 + $0x1c8] sm:$0xff]
    %v85 = vld [vmem:[%s0 + $0x1d0] sm:$0xff]
    %v86 = vld [vmem:[%s0 + $0x1d8] sm:$0xff]
    %v87 = vld [vmem:[%s0 + $0x1e0] sm:$0xff]
    %v88 = vld [vmem:[%s0 + $0x1e8] sm:$0xff]
    %v89 = vld [vmem:[%s0 + $0x1f0] sm:$0xff]
    %v90 = vld [vmem:[%s0 + $0x1f8] sm:$0xff]
    %v91 = vld [vmem:[%s1] sm:$0xff]
    %v92 = vld [vmem:[%s1 + $0x8] sm:$0x3]
    %vm93 = vcmask 80896
    %v95 = vsel %vm93, %v27, 0
    %v98 = vsel %vm93, %v28, 0
    %v101 = vsel %vm93, %v29, 0
    %v104 = vsel %vm93, %v30, 0
    %v107 = vsel %vm93, %v31, 0
    %v110 = vsel %vm93, %v32, 0
    %v113 = vsel %vm93, %v33, 0
    %v116 = vsel %vm93, %v34, 0
    %v119 = vsel %vm93, %v35, 0
    %v122 = vsel %vm93, %v36, 0
    %v125 = vsel %vm93, %v37, 0
    %v128 = vsel %vm93, %v38, 0
    %v131 = vsel %vm93, %v39, 0
    %v134 = vsel %vm93, %v40, 0
    %v137 = vsel %vm93, %v41, 0
    %v140 = vsel %vm93, %v42, 0
    %v143 = vsel %vm93, %v43, 0
    %v146 = vsel %vm93, %v44, 0
    %v149 = vsel %vm93, %v45, 0
    %v152 = vsel %vm93, %v46, 0
    %v155 = vsel %vm93, %v47, 0
    %v158 = vsel %vm93, %v48, 0
    %v161 = vsel %vm93, %v49, 0
    %v164 = vsel %vm93, %v50, 0
    %v167 = vsel %vm93, %v51, 0
    %v170 = vsel %vm93, %v52, 0
    %v173 = vsel %vm93, %v53, 0
    %v176 = vsel %vm93, %v54, 0
    %v179 = vsel %vm93, %v55, 0
    %v182 = vsel %vm93, %v56, 0
    %v185 = vsel %vm93, %v57, 0
    %v188 = vsel %vm93, %v58, 0
    %v191 = vsel %vm93, %v59, 0
    %v194 = vsel %vm93, %v60, 0
    %v197 = vsel %vm93, %v61, 0
    %v200 = vsel %vm93, %v62, 0
    %v203 = vsel %vm93, %v63, 0
    %v206 = vsel %vm93, %v64, 0
    %v209 = vsel %vm93, %v65, 0
    %v212 = vsel %vm93, %v66, 0
    %v215 = vsel %vm93, %v67, 0
    %v218 = vsel %vm93, %v68, 0
    %v221 = vsel %vm93, %v69, 0
    %v224 = vsel %vm93, %v70, 0
    %v227 = vsel %vm93, %v71, 0
    %v230 = vsel %vm93, %v72, 0
    %v233 = vsel %vm93, %v73, 0
    %v236 = vsel %vm93, %v74, 0
    %v239 = vsel %vm93, %v75, 0
    %v242 = vsel %vm93, %v76, 0
    %v245 = vsel %vm93, %v77, 0
    %v248 = vsel %vm93, %v78, 0
    %v251 = vsel %vm93, %v79, 0
    %v254 = vsel %vm93, %v80, 0
    %v257 = vsel %vm93, %v81, 0
    %v260 = vsel %vm93, %v82, 0
    %v263 = vsel %vm93, %v83, 0
    %v266 = vsel %vm93, %v84, 0
    %v269 = vsel %vm93, %v85, 0
    %v272 = vsel %vm93, %v86, 0
    %v275 = vsel %vm93, %v87, 0
    %v278 = vsel %vm93, %v88, 0
    %v281 = vsel %vm93, %v89, 0
    %v284 = vsel %vm93, %v90, 0
    %vm286 = vcmask 1041408
    %v288 = vsel %vm286, %v92, 0
    %290 = vmatprep.subr.mxu0 0.0
    %291 = vmatpush1.msra.mxu0 0.0
    %292 = vmatprep.subr.mxu0 0.0
    %293 = vmatpush1.msra.mxu0 0.0
    %294 = vmatprep.subr.mxu0 0.0
    %295 = vmatpush1.msra.mxu0 0.0
    %296 = vmatprep.subr.mxu0 0.0
    %297 = vmatpush1.msra.mxu0 0.0
    %298 = vmatprep.subr.mxu0 0.0
    %299 = vmatpush1.msra.mxu0 0.0
    %300 = vmatprep.subr.mxu0 0.0
    %301 = vmatpush1.msra.mxu0 0.0
    %302 = vmatprep.subr.mxu0 0.0
    %303 = vmatpush1.msra.mxu0 0.0
    %304 = vmatprep.subr.mxu0 0.0
    %305 = vmatpush1.msra.mxu0 0.0
    %306 = vmatprep.subr.mxu0 0.0
    %307 = vmatpush1.msra.mxu0 0.0
    %308 = vmatprep.subr.mxu0 0.0
    %309 = vmatpush1.msra.mxu0 0.0
    %310 = vmatprep.subr.mxu0 0.0
    %311 = vmatpush1.msra.mxu0 0.0
    %312 = vmatprep.subr.mxu0 0.0
    %313 = vmatpush1.msra.mxu0 0.0
    %314 = vmatprep.subr.mxu0 0.0
    %315 = vmatpush1.msra.mxu0 0.0
    %316 = vmatprep.subr.mxu0 0.0
    %317 = vmatpush1.msra.mxu0 0.0
    %318 = vmatprep.subr.mxu0 0.0
    %319 = vmatpush1.msra.mxu0 %v288
    %320 = vmatprep.subr.mxu0 0.0
    %321 = vmatpush1.msra.mxu0 %v91
    %322 = vmatprep.subr.mxu0 0.0
    %323 = vmatpush2.msra.mxu0 0.0
    %324 = vmatprep.subr.mxu0 0.0
    %325 = vmatpush2.msra.mxu0 0.0
    %326 = vmatprep.subr.mxu0 0.0
    %327 = vmatpush2.msra.mxu0 0.0
    %328 = vmatprep.subr.mxu0 0.0
    %329 = vmatpush2.msra.mxu0 0.0
    %330 = vmatprep.subr.mxu0 0.0
    %331 = vmatpush2.msra.mxu0 0.0
    %332 = vmatprep.subr.mxu0 0.0
    %333 = vmatpush2.msra.mxu0 0.0
    %334 = vmatprep.subr.mxu0 0.0
    %335 = vmatpush2.msra.mxu0 0.0
    %336 = vmatprep.subr.mxu0 0.0
    %337 = vmatpush2.msra.mxu0 0.0
    %338 = vmatprep.subr.mxu0 0.0
    %339 = vmatpush2.msra.mxu0 0.0
    %340 = vmatprep.subr.mxu0 0.0
    %341 = vmatpush2.msra.mxu0 0.0
    %342 = vmatprep.subr.mxu0 0.0
    %343 = vmatpush2.msra.mxu0 0.0
    %344 = vmatprep.subr.mxu0 0.0
    %345 = vmatpush2.msra.mxu0 0.0
    %346 = vmatprep.subr.mxu0 0.0
    %347 = vmatpush2.msra.mxu0 0.0
    %348 = vmatprep.subr.mxu0 0.0
    %349 = vmatpush2.msra.mxu0 0.0
    %350 = vmatprep.subr.mxu0 0.0
    %351 = vmatpush2.msra.mxu0 0.0
    %352 = vmatprep.subr.mxu0 0.0
    %353 = vmatpush2.msra.mxu0 0.0
    %354 = vmatprep.mubr.f32.mxu0 0.0
    %355 = vmatmul.mubr.f32.gmra.mxu0 %v95
    %v356 = vpop.f32.mrf.mxu0
    %v357 = vadd.f32 0.0, %v356
    %v358 = vpop.f32.mrf.mxu0
    %359 = vmatprep.mubr.f32.mxu0 0.0
    %360 = vmatmul.mubr.f32.gmra.mxu0 %v98
    %v361 = vpop.f32.mrf.mxu0
    %v362 = vadd.f32 0.0, %v361
    %v363 = vpop.f32.mrf.mxu0
    %364 = vmatprep.mubr.f32.mxu0 0.0
    %365 = vmatmul.mubr.f32.gmra.mxu0 %v101
    %v366 = vpop.f32.mrf.mxu0
    %v367 = vadd.f32 0.0, %v366
    %v368 = vpop.f32.mrf.mxu0
    %369 = vmatprep.mubr.f32.mxu0 0.0
    %370 = vmatmul.mubr.f32.gmra.mxu0 %v104
    %v371 = vpop.f32.mrf.mxu0
    %v372 = vadd.f32 0.0, %v371
    %v373 = vpop.f32.mrf.mxu0
    %374 = vmatprep.mubr.f32.mxu0 0.0
    %375 = vmatmul.mubr.f32.gmra.mxu0 %v107
    %v376 = vpop.f32.mrf.mxu0
    %v377 = vadd.f32 0.0, %v376
    %v378 = vpop.f32.mrf.mxu0
    %379 = vmatprep.mubr.f32.mxu0 0.0
    %380 = vmatmul.mubr.f32.gmra.mxu0 %v110
    %v381 = vpop.f32.mrf.mxu0
    %v382 = vadd.f32 0.0, %v381
    %v383 = vpop.f32.mrf.mxu0
    %384 = vmatprep.mubr.f32.mxu0 0.0
    %385 = vmatmul.mubr.f32.gmra.mxu0 %v113
    %v386 = vpop.f32.mrf.mxu0
    %v387 = vadd.f32 0.0, %v386
    %v388 = vpop.f32.mrf.mxu0
    %389 = vmatprep.mubr.f32.mxu0 0.0
    %390 = vmatmul.mubr.f32.gmra.mxu0 %v116
    %v391 = vpop.f32.mrf.mxu0
    %v392 = vadd.f32 0.0, %v391
    %v393 = vpop.f32.mrf.mxu0
    %394 = vmatprep.mubr.f32.mxu0 0.0
    %395 = vmatmul.mubr.f32.gmra.mxu0 %v119
    %v396 = vpop.f32.mrf.mxu0
    %v397 = vadd.f32 0.0, %v396
    %v398 = vpop.f32.mrf.mxu0
    %399 = vmatprep.mubr.f32.mxu0 0.0
    %400 = vmatmul.mubr.f32.gmra.mxu0 %v122
    %v401 = vpop.f32.mrf.mxu0
    %v402 = vadd.f32 0.0, %v401
    %v403 = vpop.f32.mrf.mxu0
    %404 = vmatprep.mubr.f32.mxu0 0.0
    %405 = vmatmul.mubr.f32.gmra.mxu0 %v125
    %v406 = vpop.f32.mrf.mxu0
    %v407 = vadd.f32 0.0, %v406
    %v408 = vpop.f32.mrf.mxu0
    %409 = vmatprep.mubr.f32.mxu0 0.0
    %410 = vmatmul.mubr.f32.gmra.mxu0 %v128
    %v411 = vpop.f32.mrf.mxu0
    %v412 = vadd.f32 0.0, %v411
    %v413 = vpop.f32.mrf.mxu0
    %414 = vmatprep.mubr.f32.mxu0 0.0
    %415 = vmatmul.mubr.f32.gmra.mxu0 %v131
    %v416 = vpop.f32.mrf.mxu0
    %v417 = vadd.f32 0.0, %v416
    %v418 = vpop.f32.mrf.mxu0
    %419 = vmatprep.mubr.f32.mxu0 0.0
    %420 = vmatmul.mubr.f32.gmra.mxu0 %v134
    %v421 = vpop.f32.mrf.mxu0
    %v422 = vadd.f32 0.0, %v421
    %v423 = vpop.f32.mrf.mxu0
    %424 = vmatprep.mubr.f32.mxu0 0.0
    %425 = vmatmul.mubr.f32.gmra.mxu0 %v137
    %v426 = vpop.f32.mrf.mxu0
    %v427 = vadd.f32 0.0, %v426
    %v428 = vpop.f32.mrf.mxu0
    %429 = vmatprep.mubr.f32.mxu0 0.0
    %430 = vmatmul.mubr.f32.gmra.mxu0 %v140
    %v431 = vpop.f32.mrf.mxu0
    %v432 = vadd.f32 0.0, %v431
    %v433 = vpop.f32.mrf.mxu0
    %434 = vmatprep.mubr.f32.mxu0 0.0
    %435 = vmatmul.mubr.f32.gmra.mxu0 %v143
    %v436 = vpop.f32.mrf.mxu0
    %v437 = vadd.f32 0.0, %v436
    %v438 = vpop.f32.mrf.mxu0
    %439 = vmatprep.mubr.f32.mxu0 0.0
    %440 = vmatmul.mubr.f32.gmra.mxu0 %v146
    %v441 = vpop.f32.mrf.mxu0
    %v442 = vadd.f32 0.0, %v441
    %v443 = vpop.f32.mrf.mxu0
    %444 = vmatprep.mubr.f32.mxu0 0.0
    %445 = vmatmul.mubr.f32.gmra.mxu0 %v149
    %v446 = vpop.f32.mrf.mxu0
    %v447 = vadd.f32 0.0, %v446
    %v448 = vpop.f32.mrf.mxu0
    %449 = vmatprep.mubr.f32.mxu0 0.0
    %450 = vmatmul.mubr.f32.gmra.mxu0 %v152
    %v451 = vpop.f32.mrf.mxu0
    %v452 = vadd.f32 0.0, %v451
    %v453 = vpop.f32.mrf.mxu0
    %454 = vmatprep.mubr.f32.mxu0 0.0
    %455 = vmatmul.mubr.f32.gmra.mxu0 %v155
    %v456 = vpop.f32.mrf.mxu0
    %v457 = vadd.f32 0.0, %v456
    %v458 = vpop.f32.mrf.mxu0
    %459 = vmatprep.mubr.f32.mxu0 0.0
    %460 = vmatmul.mubr.f32.gmra.mxu0 %v158
    %v461 = vpop.f32.mrf.mxu0
    %v462 = vadd.f32 0.0, %v461
    %v463 = vpop.f32.mrf.mxu0
    %464 = vmatprep.mubr.f32.mxu0 0.0
    %465 = vmatmul.mubr.f32.gmra.mxu0 %v161
    %v466 = vpop.f32.mrf.mxu0
    %v467 = vadd.f32 0.0, %v466
    %v468 = vpop.f32.mrf.mxu0
    %469 = vmatprep.mubr.f32.mxu0 0.0
    %470 = vmatmul.mubr.f32.gmra.mxu0 %v164
    %v471 = vpop.f32.mrf.mxu0
    %v472 = vadd.f32 0.0, %v471
    %v473 = vpop.f32.mrf.mxu0
    %474 = vmatprep.mubr.f32.mxu0 0.0
    %475 = vmatmul.mubr.f32.gmra.mxu0 %v167
    %v476 = vpop.f32.mrf.mxu0
    %v477 = vadd.f32 0.0, %v476
    %v478 = vpop.f32.mrf.mxu0
    %479 = vmatprep.mubr.f32.mxu0 0.0
    %480 = vmatmul.mubr.f32.gmra.mxu0 %v170
    %v481 = vpop.f32.mrf.mxu0
    %v482 = vadd.f32 0.0, %v481
    %v483 = vpop.f32.mrf.mxu0
    %484 = vmatprep.mubr.f32.mxu0 0.0
    %485 = vmatmul.mubr.f32.gmra.mxu0 %v173
    %v486 = vpop.f32.mrf.mxu0
    %v487 = vadd.f32 0.0, %v486
    %v488 = vpop.f32.mrf.mxu0
    %489 = vmatprep.mubr.f32.mxu0 0.0
    %490 = vmatmul.mubr.f32.gmra.mxu0 %v176
    %v491 = vpop.f32.mrf.mxu0
    %v492 = vadd.f32 0.0, %v491
    %v493 = vpop.f32.mrf.mxu0
    %494 = vmatprep.mubr.f32.mxu0 0.0
    %495 = vmatmul.mubr.f32.gmra.mxu0 %v179
    %v496 = vpop.f32.mrf.mxu0
    %v497 = vadd.f32 0.0, %v496
    %v498 = vpop.f32.mrf.mxu0
    %499 = vmatprep.mubr.f32.mxu0 0.0
    %500 = vmatmul.mubr.f32.gmra.mxu0 %v182
    %v501 = vpop.f32.mrf.mxu0
    %v502 = vadd.f32 0.0, %v501
    %v503 = vpop.f32.mrf.mxu0
    %504 = vmatprep.mubr.f32.mxu0 0.0
    %505 = vmatmul.mubr.f32.gmra.mxu0 %v185
    %v506 = vpop.f32.mrf.mxu0
    %v507 = vadd.f32 0.0, %v506
    %v508 = vpop.f32.mrf.mxu0
    %509 = vmatprep.mubr.f32.mxu0 0.0
    %510 = vmatmul.mubr.f32.gmra.mxu0 %v188
    %v511 = vpop.f32.mrf.mxu0
    %v512 = vadd.f32 0.0, %v511
    %v513 = vpop.f32.mrf.mxu0
    %514 = vmatprep.mubr.f32.mxu0 0.0
    %515 = vmatmul.mubr.f32.gmra.mxu0 %v191
    %v516 = vpop.f32.mrf.mxu0
    %v517 = vadd.f32 0.0, %v516
    %v518 = vpop.f32.mrf.mxu0
    %519 = vmatprep.mubr.f32.mxu0 0.0
    %520 = vmatmul.mubr.f32.gmra.mxu0 %v194
    %v521 = vpop.f32.mrf.mxu0
    %v522 = vadd.f32 0.0, %v521
    %v523 = vpop.f32.mrf.mxu0
    %524 = vmatprep.mubr.f32.mxu0 0.0
    %525 = vmatmul.mubr.f32.gmra.mxu0 %v197
    %v526 = vpop.f32.mrf.mxu0
    %v527 = vadd.f32 0.0, %v526
    %v528 = vpop.f32.mrf.mxu0
    %529 = vmatprep.mubr.f32.mxu0 0.0
    %530 = vmatmul.mubr.f32.gmra.mxu0 %v200
    %v531 = vpop.f32.mrf.mxu0
    %v532 = vadd.f32 0.0, %v531
    %v533 = vpop.f32.mrf.mxu0
    %534 = vmatprep.mubr.f32.mxu0 0.0
    %535 = vmatmul.mubr.f32.gmra.mxu0 %v203
    %v536 = vpop.f32.mrf.mxu0
    %v537 = vadd.f32 0.0, %v536
    %v538 = vpop.f32.mrf.mxu0
    %539 = vmatprep.mubr.f32.mxu0 0.0
    %540 = vmatmul.mubr.f32.gmra.mxu0 %v206
    %v541 = vpop.f32.mrf.mxu0
    %v542 = vadd.f32 0.0, %v541
    %v543 = vpop.f32.mrf.mxu0
    %544 = vmatprep.mubr.f32.mxu0 0.0
    %545 = vmatmul.mubr.f32.gmra.mxu0 %v209
    %v546 = vpop.f32.mrf.mxu0
    %v547 = vadd.f32 0.0, %v546
    %v548 = vpop.f32.mrf.mxu0
    %549 = vmatprep.mubr.f32.mxu0 0.0
    %550 = vmatmul.mubr.f32.gmra.mxu0 %v212
    %v551 = vpop.f32.mrf.mxu0
    %v552 = vadd.f32 0.0, %v551
    %v553 = vpop.f32.mrf.mxu0
    %554 = vmatprep.mubr.f32.mxu0 0.0
    %555 = vmatmul.mubr.f32.gmra.mxu0 %v215
    %v556 = vpop.f32.mrf.mxu0
    %v557 = vadd.f32 0.0, %v556
    %v558 = vpop.f32.mrf.mxu0
    %559 = vmatprep.mubr.f32.mxu0 0.0
    %560 = vmatmul.mubr.f32.gmra.mxu0 %v218
    %v561 = vpop.f32.mrf.mxu0
    %v562 = vadd.f32 0.0, %v561
    %v563 = vpop.f32.mrf.mxu0
    %564 = vmatprep.mubr.f32.mxu0 0.0
    %565 = vmatmul.mubr.f32.gmra.mxu0 %v221
    %v566 = vpop.f32.mrf.mxu0
    %v567 = vadd.f32 0.0, %v566
    %v568 = vpop.f32.mrf.mxu0
    %569 = vmatprep.mubr.f32.mxu0 0.0
    %570 = vmatmul.mubr.f32.gmra.mxu0 %v224
    %v571 = vpop.f32.mrf.mxu0
    %v572 = vadd.f32 0.0, %v571
    %v573 = vpop.f32.mrf.mxu0
    %574 = vmatprep.mubr.f32.mxu0 0.0
    %575 = vmatmul.mubr.f32.gmra.mxu0 %v227
    %v576 = vpop.f32.mrf.mxu0
    %v577 = vadd.f32 0.0, %v576
    %v578 = vpop.f32.mrf.mxu0
    %579 = vmatprep.mubr.f32.mxu0 0.0
    %580 = vmatmul.mubr.f32.gmra.mxu0 %v230
    %v581 = vpop.f32.mrf.mxu0
    %v582 = vadd.f32 0.0, %v581
    %v583 = vpop.f32.mrf.mxu0
    %584 = vmatprep.mubr.f32.mxu0 0.0
    %585 = vmatmul.mubr.f32.gmra.mxu0 %v233
    %v586 = vpop.f32.mrf.mxu0
    %v587 = vadd.f32 0.0, %v586
    %v588 = vpop.f32.mrf.mxu0
    %589 = vmatprep.mubr.f32.mxu0 0.0
    %590 = vmatmul.mubr.f32.gmra.mxu0 %v236
    %v591 = vpop.f32.mrf.mxu0
    %v592 = vadd.f32 0.0, %v591
    %v593 = vpop.f32.mrf.mxu0
    %594 = vmatprep.mubr.f32.mxu0 0.0
    %595 = vmatmul.mubr.f32.gmra.mxu0 %v239
    %v596 = vpop.f32.mrf.mxu0
    %v597 = vadd.f32 0.0, %v596
    %v598 = vpop.f32.mrf.mxu0
    %599 = vmatprep.mubr.f32.mxu0 0.0
    %600 = vmatmul.mubr.f32.gmra.mxu0 %v242
    %v601 = vpop.f32.mrf.mxu0
    %v602 = vadd.f32 0.0, %v601
    %v603 = vpop.f32.mrf.mxu0
    %604 = vmatprep.mubr.f32.mxu0 0.0
    %605 = vmatmul.mubr.f32.gmra.mxu0 %v245
    %v606 = vpop.f32.mrf.mxu0
    %v607 = vadd.f32 0.0, %v606
    %v608 = vpop.f32.mrf.mxu0
    %609 = vmatprep.mubr.f32.mxu0 0.0
    %610 = vmatmul.mubr.f32.gmra.mxu0 %v248
    %v611 = vpop.f32.mrf.mxu0
    %v612 = vadd.f32 0.0, %v611
    %v613 = vpop.f32.mrf.mxu0
    %614 = vmatprep.mubr.f32.mxu0 0.0
    %615 = vmatmul.mubr.f32.gmra.mxu0 %v251
    %v616 = vpop.f32.mrf.mxu0
    %v617 = vadd.f32 0.0, %v616
    %v618 = vpop.f32.mrf.mxu0
    %619 = vmatprep.mubr.f32.mxu0 0.0
    %620 = vmatmul.mubr.f32.gmra.mxu0 %v254
    %v621 = vpop.f32.mrf.mxu0
    %v622 = vadd.f32 0.0, %v621
    %v623 = vpop.f32.mrf.mxu0
    %624 = vmatprep.mubr.f32.mxu0 0.0
    %625 = vmatmul.mubr.f32.gmra.mxu0 %v257
    %v626 = vpop.f32.mrf.mxu0
    %v627 = vadd.f32 0.0, %v626
    %v628 = vpop.f32.mrf.mxu0
    %629 = vmatprep.mubr.f32.mxu0 0.0
    %630 = vmatmul.mubr.f32.gmra.mxu0 %v260
    %v631 = vpop.f32.mrf.mxu0
    %v632 = vadd.f32 0.0, %v631
    %v633 = vpop.f32.mrf.mxu0
    %634 = vmatprep.mubr.f32.mxu0 0.0
    %635 = vmatmul.mubr.f32.gmra.mxu0 %v263
    %v636 = vpop.f32.mrf.mxu0
    %v637 = vadd.f32 0.0, %v636
    %v638 = vpop.f32.mrf.mxu0
    %639 = vmatprep.mubr.f32.mxu0 0.0
    %640 = vmatmul.mubr.f32.gmra.mxu0 %v266
    %v641 = vpop.f32.mrf.mxu0
    %v642 = vadd.f32 0.0, %v641
    %v643 = vpop.f32.mrf.mxu0
    %644 = vmatprep.mubr.f32.mxu0 0.0
    %645 = vmatmul.mubr.f32.gmra.mxu0 %v269
    %v646 = vpop.f32.mrf.mxu0
    %v647 = vadd.f32 0.0, %v646
    %v648 = vpop.f32.mrf.mxu0
    %649 = vmatprep.mubr.f32.mxu0 0.0
    %650 = vmatmul.mubr.f32.gmra.mxu0 %v272
    %v651 = vpop.f32.mrf.mxu0
    %v652 = vadd.f32 0.0, %v651
    %v653 = vpop.f32.mrf.mxu0
    %654 = vmatprep.mubr.f32.mxu0 0.0
    %655 = vmatmul.mubr.f32.gmra.mxu0 %v275
    %v656 = vpop.f32.mrf.mxu0
    %v657 = vadd.f32 0.0, %v656
    %v658 = vpop.f32.mrf.mxu0
    %659 = vmatprep.mubr.f32.mxu0 0.0
    %660 = vmatmul.mubr.f32.gmra.mxu0 %v278
    %v661 = vpop.f32.mrf.mxu0
    %v662 = vadd.f32 0.0, %v661
    %v663 = vpop.f32.mrf.mxu0
    %664 = vmatprep.mubr.f32.mxu0 0.0
    %665 = vmatmul.mubr.f32.gmra.mxu0 %v281
    %v666 = vpop.f32.mrf.mxu0
    %v667 = vadd.f32 0.0, %v666
    %v668 = vpop.f32.mrf.mxu0
    %669 = vmatprep.mubr.f32.mxu0 0.0
    %670 = vmatmul.mubr.f32.gmra.mxu0 %v284
    %v671 = vpop.f32.mrf.mxu0
    %v672 = vadd.f32 0.0, %v671
    %v673 = vpop.f32.mrf.mxu0
    %674 = vdwg.mxu0
    %v675 = vxor.u32 %v357, 2147483648
    %v676 = vxor.u32 %v362, 2147483648
    %v677 = vxor.u32 %v367, 2147483648
    %v678 = vxor.u32 %v372, 2147483648
    %v679 = vxor.u32 %v377, 2147483648
    %v680 = vxor.u32 %v382, 2147483648
    %v681 = vxor.u32 %v387, 2147483648
    %v682 = vxor.u32 %v392, 2147483648
    %v683 = vxor.u32 %v397, 2147483648
    %v684 = vxor.u32 %v402, 2147483648
    %v685 = vxor.u32 %v407, 2147483648
    %v686 = vxor.u32 %v412, 2147483648
    %v687 = vxor.u32 %v417, 2147483648
    %v688 = vxor.u32 %v422, 2147483648
    %v689 = vxor.u32 %v427, 2147483648
    %v690 = vxor.u32 %v432, 2147483648
    %v691 = vxor.u32 %v437, 2147483648
    %v692 = vxor.u32 %v442, 2147483648
    %v693 = vxor.u32 %v447, 2147483648
    %v694 = vxor.u32 %v452, 2147483648
    %v695 = vxor.u32 %v457, 2147483648
    %v696 = vxor.u32 %v462, 2147483648
    %v697 = vxor.u32 %v467, 2147483648
    %v698 = vxor.u32 %v472, 2147483648
    %v699 = vxor.u32 %v477, 2147483648
    %v700 = vxor.u32 %v482, 2147483648
    %v701 = vxor.u32 %v487, 2147483648
    %v702 = vxor.u32 %v492, 2147483648
    %v703 = vxor.u32 %v497, 2147483648
    %v704 = vxor.u32 %v502, 2147483648
    %v705 = vxor.u32 %v507, 2147483648
    %v706 = vxor.u32 %v512, 2147483648
    %v707 = vxor.u32 %v517, 2147483648
    %v708 = vxor.u32 %v522, 2147483648
    %v709 = vxor.u32 %v527, 2147483648
    %v710 = vxor.u32 %v532, 2147483648
    %v711 = vxor.u32 %v537, 2147483648
    %v712 = vxor.u32 %v542, 2147483648
    %v713 = vxor.u32 %v547, 2147483648
    %v714 = vxor.u32 %v552, 2147483648
    %v715 = vxor.u32 %v557, 2147483648
    %v716 = vxor.u32 %v562, 2147483648
    %v717 = vxor.u32 %v567, 2147483648
    %v718 = vxor.u32 %v572, 2147483648
    %v719 = vxor.u32 %v577, 2147483648
    %v720 = vxor.u32 %v582, 2147483648
    %v721 = vxor.u32 %v587, 2147483648
    %v722 = vxor.u32 %v592, 2147483648
    %v723 = vxor.u32 %v597, 2147483648
    %v724 = vxor.u32 %v602, 2147483648
    %v725 = vxor.u32 %v607, 2147483648
    %v726 = vxor.u32 %v612, 2147483648
    %v727 = vxor.u32 %v617, 2147483648
    %v728 = vxor.u32 %v622, 2147483648
    %v729 = vxor.u32 %v627, 2147483648
    %v730 = vxor.u32 %v632, 2147483648
    %v731 = vxor.u32 %v637, 2147483648
    %v732 = vxor.u32 %v642, 2147483648
    %v733 = vxor.u32 %v647, 2147483648
    %v734 = vxor.u32 %v652, 2147483648
    %v735 = vxor.u32 %v657, 2147483648
    %v736 = vxor.u32 %v662, 2147483648
    %v737 = vxor.u32 %v667, 2147483648
    %v738 = vxor.u32 %v672, 2147483648
    %v739 = vmul.f32 %v675, 1.442695
    %v740 = vpow.pop %v739
    %v741 = vmul.f32 %v676, 1.442695
    %v742 = vpow.pop %v741
    %v743 = vmul.f32 %v677, 1.442695
    %v744 = vpow.pop %v743
    %v745 = vmul.f32 %v678, 1.442695
    %v746 = vpow.pop %v745
    %v747 = vmul.f32 %v679, 1.442695
    %v748 = vpow.pop %v747
    %v749 = vmul.f32 %v680, 1.442695
    %v750 = vpow.pop %v749
    %v751 = vmul.f32 %v681, 1.442695
    %v752 = vpow.pop %v751
    %v753 = vmul.f32 %v682, 1.442695
    %v754 = vpow.pop %v753
    %v755 = vmul.f32 %v683, 1.442695
    %v756 = vpow.pop %v755
    %v757 = vmul.f32 %v684, 1.442695
    %v758 = vpow.pop %v757
    %v759 = vmul.f32 %v685, 1.442695
    %v760 = vpow.pop %v759
    %v761 = vmul.f32 %v686, 1.442695
    %v762 = vpow.pop %v761
    %v763 = vmul.f32 %v687, 1.442695
    %v764 = vpow.pop %v763
    %v765 = vmul.f32 %v688, 1.442695
    %v766 = vpow.pop %v765
    %v767 = vmul.f32 %v689, 1.442695
    %v768 = vpow.pop %v767
    %v769 = vmul.f32 %v690, 1.442695
    %v770 = vpow.pop %v769
    %v771 = vmul.f32 %v691, 1.442695
    %v772 = vpow.pop %v771
    %v773 = vmul.f32 %v692, 1.442695
    %v774 = vpow.pop %v773
    %v775 = vmul.f32 %v693, 1.442695
    %v776 = vpow.pop %v775
    %v777 = vmul.f32 %v694, 1.442695
    %v778 = vpow.pop %v777
    %v779 = vmul.f32 %v695, 1.442695
    %v780 = vpow.pop %v779
    %v781 = vmul.f32 %v696, 1.442695
    %v782 = vpow.pop %v781
    %v783 = vmul.f32 %v697, 1.442695
    %v784 = vpow.pop %v783
    %v785 = vmul.f32 %v698, 1.442695
    %v786 = vpow.pop %v785
    %v787 = vmul.f32 %v699, 1.442695
    %v788 = vpow.pop %v787
    %v789 = vmul.f32 %v700, 1.442695
    %v790 = vpow.pop %v789
    %v791 = vmul.f32 %v701, 1.442695
    %v792 = vpow.pop %v791
    %v793 = vmul.f32 %v702, 1.442695
    %v794 = vpow.pop %v793
    %v795 = vmul.f32 %v703, 1.442695
    %v796 = vpow.pop %v795
    %v797 = vmul.f32 %v704, 1.442695
    %v798 = vpow.pop %v797
    %v799 = vmul.f32 %v705, 1.442695
    %v800 = vpow.pop %v799
    %v801 = vmul.f32 %v706, 1.442695
    %v802 = vpow.pop %v801
    %v803 = vmul.f32 %v707, 1.442695
    %v804 = vpow.pop %v803
    %v805 = vmul.f32 %v708, 1.442695
    %v806 = vpow.pop %v805
    %v807 = vmul.f32 %v709, 1.442695
    %v808 = vpow.pop %v807
    %v809 = vmul.f32 %v710, 1.442695
    %v810 = vpow.pop %v809
    %v811 = vmul.f32 %v711, 1.442695
    %v812 = vpow.pop %v811
    %v813 = vmul.f32 %v712, 1.442695
    %v814 = vpow.pop %v813
    %v815 = vmul.f32 %v713, 1.442695
    %v816 = vpow.pop %v815
    %v817 = vmul.f32 %v714, 1.442695
    %v818 = vpow.pop %v817
    %v819 = vmul.f32 %v715, 1.442695
    %v820 = vpow.pop %v819
    %v821 = vmul.f32 %v716, 1.442695
    %v822 = vpow.pop %v821
    %v823 = vmul.f32 %v717, 1.442695
    %v824 = vpow.pop %v823
    %v825 = vmul.f32 %v718, 1.442695
    %v826 = vpow.pop %v825
    %v827 = vmul.f32 %v719, 1.442695
    %v828 = vpow.pop %v827
    %v829 = vmul.f32 %v720, 1.442695
    %v830 = vpow.pop %v829
    %v831 = vmul.f32 %v721, 1.442695
    %v832 = vpow.pop %v831
    %v833 = vmul.f32 %v722, 1.442695
    %v834 = vpow.pop %v833
    %v835 = vmul.f32 %v723, 1.442695
    %v836 = vpow.pop %v835
    %v837 = vmul.f32 %v724, 1.442695
    %v838 = vpow.pop %v837
    %v839 = vmul.f32 %v725, 1.442695
    %v840 = vpow.pop %v839
    %v841 = vmul.f32 %v726, 1.442695
    %v842 = vpow.pop %v841
    %v843 = vmul.f32 %v727, 1.442695
    %v844 = vpow.pop %v843
    %v845 = vmul.f32 %v728, 1.442695
    %v846 = vpow.pop %v845
    %v847 = vmul.f32 %v729, 1.442695
    %v848 = vpow.pop %v847
    %v849 = vmul.f32 %v730, 1.442695
    %v850 = vpow.pop %v849
    %v851 = vmul.f32 %v731, 1.442695
    %v852 = vpow.pop %v851
    %v853 = vmul.f32 %v732, 1.442695
    %v854 = vpow.pop %v853
    %v855 = vmul.f32 %v733, 1.442695
    %v856 = vpow.pop %v855
    %v857 = vmul.f32 %v734, 1.442695
    %v858 = vpow.pop %v857
    %v859 = vmul.f32 %v735, 1.442695
    %v860 = vpow.pop %v859
    %v861 = vmul.f32 %v736, 1.442695
    %v862 = vpow.pop %v861
    %v863 = vmul.f32 %v737, 1.442695
    %v864 = vpow.pop %v863
    %v865 = vmul.f32 %v738, 1.442695
    %v866 = vpow.pop %v865
    %v867 = vadd.f32 %v740, 1.0
    %v868 = vadd.f32 %v742, 1.0
    %v869 = vadd.f32 %v744, 1.0
    %v870 = vadd.f32 %v746, 1.0
    %v871 = vadd.f32 %v748, 1.0
    %v872 = vadd.f32 %v750, 1.0
    %v873 = vadd.f32 %v752, 1.0
    %v874 = vadd.f32 %v754, 1.0
    %v875 = vadd.f32 %v756, 1.0
    %v876 = vadd.f32 %v758, 1.0
    %v877 = vadd.f32 %v760, 1.0
    %v878 = vadd.f32 %v762, 1.0
    %v879 = vadd.f32 %v764, 1.0
    %v880 = vadd.f32 %v766, 1.0
    %v881 = vadd.f32 %v768, 1.0
    %v882 = vadd.f32 %v770, 1.0
    %v883 = vadd.f32 %v772, 1.0
    %v884 = vadd.f32 %v774, 1.0
    %v885 = vadd.f32 %v776, 1.0
    %v886 = vadd.f32 %v778, 1.0
    %v887 = vadd.f32 %v780, 1.0
    %v888 = vadd.f32 %v782, 1.0
    %v889 = vadd.f32 %v784, 1.0
    %v890 = vadd.f32 %v786, 1.0
    %v891 = vadd.f32 %v788, 1.0
    %v892 = vadd.f32 %v790, 1.0
    %v893 = vadd.f32 %v792, 1.0
    %v894 = vadd.f32 %v794, 1.0
    %v895 = vadd.f32 %v796, 1.0
    %v896 = vadd.f32 %v798, 1.0
    %v897 = vadd.f32 %v800, 1.0
    %v898 = vadd.f32 %v802, 1.0
    %v899 = vadd.f32 %v804, 1.0
    %v900 = vadd.f32 %v806, 1.0
    %v901 = vadd.f32 %v808, 1.0
    %v902 = vadd.f32 %v810, 1.0
    %v903 = vadd.f32 %v812, 1.0
    %v904 = vadd.f32 %v814, 1.0
    %v905 = vadd.f32 %v816, 1.0
    %v906 = vadd.f32 %v818, 1.0
    %v907 = vadd.f32 %v820, 1.0
    %v908 = vadd.f32 %v822, 1.0
    %v909 = vadd.f32 %v824, 1.0
    %v910 = vadd.f32 %v826, 1.0
    %v911 = vadd.f32 %v828, 1.0
    %v912 = vadd.f32 %v830, 1.0
    %v913 = vadd.f32 %v832, 1.0
    %v914 = vadd.f32 %v834, 1.0
    %v915 = vadd.f32 %v836, 1.0
    %v916 = vadd.f32 %v838, 1.0
    %v917 = vadd.f32 %v840, 1.0
    %v918 = vadd.f32 %v842, 1.0
    %v919 = vadd.f32 %v844, 1.0
    %v920 = vadd.f32 %v846, 1.0
    %v921 = vadd.f32 %v848, 1.0
    %v922 = vadd.f32 %v850, 1.0
    %v923 = vadd.f32 %v852, 1.0
    %v924 = vadd.f32 %v854, 1.0
    %v925 = vadd.f32 %v856, 1.0
    %v926 = vadd.f32 %v858, 1.0
    %v927 = vadd.f32 %v860, 1.0
    %v928 = vadd.f32 %v862, 1.0
    %v929 = vadd.f32 %v864, 1.0
    %v930 = vadd.f32 %v866, 1.0
    %v931 = vrcp.pop %v867
    %v932 = vmul.f32 1.0, %v931
    %v933 = vrcp.pop %v868
    %v934 = vmul.f32 1.0, %v933
    %v935 = vrcp.pop %v869
    %v936 = vmul.f32 1.0, %v935
    %v937 = vrcp.pop %v870
    %v938 = vmul.f32 1.0, %v937
    %v939 = vrcp.pop %v871
    %v940 = vmul.f32 1.0, %v939
    %v941 = vrcp.pop %v872
    %v942 = vmul.f32 1.0, %v941
    %v943 = vrcp.pop %v873
    %v944 = vmul.f32 1.0, %v943
    %v945 = vrcp.pop %v874
    %v946 = vmul.f32 1.0, %v945
    %v947 = vrcp.pop %v875
    %v948 = vmul.f32 1.0, %v947
    %v949 = vrcp.pop %v876
    %v950 = vmul.f32 1.0, %v949
    %v951 = vrcp.pop %v877
    %v952 = vmul.f32 1.0, %v951
    %v953 = vrcp.pop %v878
    %v954 = vmul.f32 1.0, %v953
    %v955 = vrcp.pop %v879
    %v956 = vmul.f32 1.0, %v955
    %v957 = vrcp.pop %v880
    %v958 = vmul.f32 1.0, %v957
    %v959 = vrcp.pop %v881
    %v960 = vmul.f32 1.0, %v959
    %v961 = vrcp.pop %v882
    %v962 = vmul.f32 1.0, %v961
    %v963 = vrcp.pop %v883
    %v964 = vmul.f32 1.0, %v963
    %v965 = vrcp.pop %v884
    %v966 = vmul.f32 1.0, %v965
    %v967 = vrcp.pop %v885
    %v968 = vmul.f32 1.0, %v967
    %v969 = vrcp.pop %v886
    %v970 = vmul.f32 1.0, %v969
    %v971 = vrcp.pop %v887
    %v972 = vmul.f32 1.0, %v971
    %v973 = vrcp.pop %v888
    %v974 = vmul.f32 1.0, %v973
    %v975 = vrcp.pop %v889
    %v976 = vmul.f32 1.0, %v975
    %v977 = vrcp.pop %v890
    %v978 = vmul.f32 1.0, %v977
    %v979 = vrcp.pop %v891
    %v980 = vmul.f32 1.0, %v979
    %v981 = vrcp.pop %v892
    %v982 = vmul.f32 1.0, %v981
    %v983 = vrcp.pop %v893
    %v984 = vmul.f32 1.0, %v983
    %v985 = vrcp.pop %v894
    %v986 = vmul.f32 1.0, %v985
    %v987 = vrcp.pop %v895
    %v988 = vmul.f32 1.0, %v987
    %v989 = vrcp.pop %v896
    %v990 = vmul.f32 1.0, %v989
    %v991 = vrcp.pop %v897
    %v992 = vmul.f32 1.0, %v991
    %v993 = vrcp.pop %v898
    %v994 = vmul.f32 1.0, %v993
    %v995 = vrcp.pop %v899
    %v996 = vmul.f32 1.0, %v995
    %v997 = vrcp.pop %v900
    %v998 = vmul.f32 1.0, %v997
    %v999 = vrcp.pop %v901
    %v1000 = vmul.f32 1.0, %v999
    %v1001 = vrcp.pop %v902
    %v1002 = vmul.f32 1.0, %v1001
    %v1003 = vrcp.pop %v903
    %v1004 = vmul.f32 1.0, %v1003
    %v1005 = vrcp.pop %v904
    %v1006 = vmul.f32 1.0, %v1005
    %v1007 = vrcp.pop %v905
    %v1008 = vmul.f32 1.0, %v1007
    %v1009 = vrcp.pop %v906
    %v1010 = vmul.f32 1.0, %v1009
    %v1011 = vrcp.pop %v907
    %v1012 = vmul.f32 1.0, %v1011
    %v1013 = vrcp.pop %v908
    %v1014 = vmul.f32 1.0, %v1013
    %v1015 = vrcp.pop %v909
    %v1016 = vmul.f32 1.0, %v1015
    %v1017 = vrcp.pop %v910
    %v1018 = vmul.f32 1.0, %v1017
    %v1019 = vrcp.pop %v911
    %v1020 = vmul.f32 1.0, %v1019
    %v1021 = vrcp.pop %v912
    %v1022 = vmul.f32 1.0, %v1021
    %v1023 = vrcp.pop %v913
    %v1024 = vmul.f32 1.0, %v1023
    %v1025 = vrcp.pop %v914
    %v1026 = vmul.f32 1.0, %v1025
    %v1027 = vrcp.pop %v915
    %v1028 = vmul.f32 1.0, %v1027
    %v1029 = vrcp.pop %v916
    %v1030 = vmul.f32 1.0, %v1029
    %v1031 = vrcp.pop %v917
    %v1032 = vmul.f32 1.0, %v1031
    %v1033 = vrcp.pop %v918
    %v1034 = vmul.f32 1.0, %v1033
    %v1035 = vrcp.pop %v919
    %v1036 = vmul.f32 1.0, %v1035
    %v1037 = vrcp.pop %v920
    %v1038 = vmul.f32 1.0, %v1037
    %v1039 = vrcp.pop %v921
    %v1040 = vmul.f32 1.0, %v1039
    %v1041 = vrcp.pop %v922
    %v1042 = vmul.f32 1.0, %v1041
    %v1043 = vrcp.pop %v923
    %v1044 = vmul.f32 1.0, %v1043
    %v1045 = vrcp.pop %v924
    %v1046 = vmul.f32 1.0, %v1045
    %v1047 = vrcp.pop %v925
    %v1048 = vmul.f32 1.0, %v1047
    %v1049 = vrcp.pop %v926
    %v1050 = vmul.f32 1.0, %v1049
    %v1051 = vrcp.pop %v927
    %v1052 = vmul.f32 1.0, %v1051
    %v1053 = vrcp.pop %v928
    %v1054 = vmul.f32 1.0, %v1053
    %v1055 = vrcp.pop %v929
    %v1056 = vmul.f32 1.0, %v1055
    %v1057 = vrcp.pop %v930
    %v1058 = vmul.f32 1.0, %v1057
    %v1059 = vmul.f32 %v357, %v932
    %v1060 = vmul.f32 %v362, %v934
    %v1061 = vmul.f32 %v367, %v936
    %v1062 = vmul.f32 %v372, %v938
    %v1063 = vmul.f32 %v377, %v940
    %v1064 = vmul.f32 %v382, %v942
    %v1065 = vmul.f32 %v387, %v944
    %v1066 = vmul.f32 %v392, %v946
    %v1067 = vmul.f32 %v397, %v948
    %v1068 = vmul.f32 %v402, %v950
    %v1069 = vmul.f32 %v407, %v952
    %v1070 = vmul.f32 %v412, %v954
    %v1071 = vmul.f32 %v417, %v956
    %v1072 = vmul.f32 %v422, %v958
    %v1073 = vmul.f32 %v427, %v960
    %v1074 = vmul.f32 %v432, %v962
    %v1075 = vmul.f32 %v437, %v964
    %v1076 = vmul.f32 %v442, %v966
    %v1077 = vmul.f32 %v447, %v968
    %v1078 = vmul.f32 %v452, %v970
    %v1079 = vmul.f32 %v457, %v972
    %v1080 = vmul.f32 %v462, %v974
    %v1081 = vmul.f32 %v467, %v976
    %v1082 = vmul.f32 %v472, %v978
    %v1083 = vmul.f32 %v477, %v980
    %v1084 = vmul.f32 %v482, %v982
    %v1085 = vmul.f32 %v487, %v984
    %v1086 = vmul.f32 %v492, %v986
    %v1087 = vmul.f32 %v497, %v988
    %v1088 = vmul.f32 %v502, %v990
    %v1089 = vmul.f32 %v507, %v992
    %v1090 = vmul.f32 %v512, %v994
    %v1091 = vmul.f32 %v517, %v996
    %v1092 = vmul.f32 %v522, %v998
    %v1093 = vmul.f32 %v527, %v1000
    %v1094 = vmul.f32 %v532, %v1002
    %v1095 = vmul.f32 %v537, %v1004
    %v1096 = vmul.f32 %v542, %v1006
    %v1097 = vmul.f32 %v547, %v1008
    %v1098 = vmul.f32 %v552, %v1010
    %v1099 = vmul.f32 %v557, %v1012
    %v1100 = vmul.f32 %v562, %v1014
    %v1101 = vmul.f32 %v567, %v1016
    %v1102 = vmul.f32 %v572, %v1018
    %v1103 = vmul.f32 %v577, %v1020
    %v1104 = vmul.f32 %v582, %v1022
    %v1105 = vmul.f32 %v587, %v1024
    %v1106 = vmul.f32 %v592, %v1026
    %v1107 = vmul.f32 %v597, %v1028
    %v1108 = vmul.f32 %v602, %v1030
    %v1109 = vmul.f32 %v607, %v1032
    %v1110 = vmul.f32 %v612, %v1034
    %v1111 = vmul.f32 %v617, %v1036
    %v1112 = vmul.f32 %v622, %v1038
    %v1113 = vmul.f32 %v627, %v1040
    %v1114 = vmul.f32 %v632, %v1042
    %v1115 = vmul.f32 %v637, %v1044
    %v1116 = vmul.f32 %v642, %v1046
    %v1117 = vmul.f32 %v647, %v1048
    %v1118 = vmul.f32 %v652, %v1050
    %v1119 = vmul.f32 %v657, %v1052
    %v1120 = vmul.f32 %v662, %v1054
    %v1121 = vmul.f32 %v667, %v1056
    %v1122 = vmul.f32 %v672, %v1058
    %v1123 = vadd.f32 %v1059, %v1060
    %v1124 = vadd.f32 %v1123, %v1061
    %v1125 = vadd.f32 %v1124, %v1062
    %v1126 = vadd.f32 %v1125, %v1063
    %v1127 = vadd.f32 %v1126, %v1064
    %v1128 = vadd.f32 %v1127, %v1065
    %v1129 = vadd.f32 %v1128, %v1066
    %v1130 = vadd.f32 %v1129, %v1067
    %v1131 = vadd.f32 %v1130, %v1068
    %v1132 = vadd.f32 %v1131, %v1069
    %v1133 = vadd.f32 %v1132, %v1070
    %v1134 = vadd.f32 %v1133, %v1071
    %v1135 = vadd.f32 %v1134, %v1072
    %v1136 = vadd.f32 %v1135, %v1073
    %v1137 = vadd.f32 %v1136, %v1074
    %v1138 = vadd.f32 %v1137, %v1075
    %v1139 = vadd.f32 %v1138, %v1076
    %v1140 = vadd.f32 %v1139, %v1077
    %v1141 = vadd.f32 %v1140, %v1078
    %v1142 = vadd.f32 %v1141, %v1079
    %v1143 = vadd.f32 %v1142, %v1080
    %v1144 = vadd.f32 %v1143, %v1081
    %v1145 = vadd.f32 %v1144, %v1082
    %v1146 = vadd.f32 %v1145, %v1083
    %v1147 = vadd.f32 %v1146, %v1084
    %v1148 = vadd.f32 %v1147, %v1085
    %v1149 = vadd.f32 %v1148, %v1086
    %v1150 = vadd.f32 %v1149, %v1087
    %v1151 = vadd.f32 %v1150, %v1088
    %v1152 = vadd.f32 %v1151, %v1089
    %v1153 = vadd.f32 %v1152, %v1090
    %v1154 = vrot.slane %v1153, 4
    %v1155 = vadd.f32 %v1153, %v1154
    %v1156 = vrot.slane %v1155, 2
    %v1157 = vadd.f32 %v1155, %v1156
    %v1158 = vrot.slane %v1157, 1
    %v1159 = vadd.f32 %v1157, %v1158
    %v1160 = vadd.f32 %v1091, %v1092
    %v1161 = vadd.f32 %v1160, %v1093
    %v1162 = vadd.f32 %v1161, %v1094
    %v1163 = vadd.f32 %v1162, %v1095
    %v1164 = vadd.f32 %v1163, %v1096
    %v1165 = vadd.f32 %v1164, %v1097
    %v1166 = vadd.f32 %v1165, %v1098
    %v1167 = vadd.f32 %v1166, %v1099
    %v1168 = vadd.f32 %v1167, %v1100
    %v1169 = vadd.f32 %v1168, %v1101
    %v1170 = vadd.f32 %v1169, %v1102
    %v1171 = vadd.f32 %v1170, %v1103
    %v1172 = vadd.f32 %v1171, %v1104
    %v1173 = vadd.f32 %v1172, %v1105
    %v1174 = vadd.f32 %v1173, %v1106
    %v1175 = vadd.f32 %v1174, %v1107
    %v1176 = vadd.f32 %v1175, %v1108
    %v1177 = vadd.f32 %v1176, %v1109
    %v1178 = vadd.f32 %v1177, %v1110
    %v1179 = vadd.f32 %v1178, %v1111
    %v1180 = vadd.f32 %v1179, %v1112
    %v1181 = vadd.f32 %v1180, %v1113
    %v1182 = vadd.f32 %v1181, %v1114
    %v1183 = vadd.f32 %v1182, %v1115
    %v1184 = vadd.f32 %v1183, %v1116
    %v1185 = vadd.f32 %v1184, %v1117
    %v1186 = vadd.f32 %v1185, %v1118
    %v1187 = vadd.f32 %v1186, %v1119
    %v1188 = vadd.f32 %v1187, %v1120
    %v1189 = vadd.f32 %v1188, %v1121
    %v1190 = vadd.f32 %v1189, %v1122
    %v1191 = vrot.slane %v1190, 4
    %v1192 = vadd.f32 %v1190, %v1191
    %v1193 = vrot.slane %v1192, 2
    %v1194 = vadd.f32 %v1192, %v1193
    %v1195 = vrot.slane %v1194, 1
    %v1196 = vadd.f32 %v1194, %v1195
    %v1197 = vld [vmem:[%s2] sm:$0xff]
    %v1198 = vld [vmem:[%s2 + $0x8] sm:$0xff]
    %v1199 = vld [vmem:[%s2 + $0x10] sm:$0xff]
    %v1200 = vld [vmem:[%s2 + $0x18] sm:$0xff]
    %v1201 = vld [vmem:[%s2 + $0x20] sm:$0xff]
    %v1202 = vld [vmem:[%s2 + $0x28] sm:$0xff]
    %v1203 = vld [vmem:[%s2 + $0x30] sm:$0xff]
    %v1204 = vld [vmem:[%s2 + $0x38] sm:$0xff]
    %v1205 = vld [vmem:[%s2 + $0x40] sm:$0xff]
    %v1206 = vld [vmem:[%s2 + $0x48] sm:$0xff]
    %v1207 = vld [vmem:[%s2 + $0x50] sm:$0xff]
    %v1208 = vld [vmem:[%s2 + $0x58] sm:$0xff]
    %v1209 = vld [vmem:[%s2 + $0x60] sm:$0xff]
    %v1210 = vld [vmem:[%s2 + $0x68] sm:$0xff]
    %v1211 = vld [vmem:[%s2 + $0x70] sm:$0xff]
    %v1212 = vld [vmem:[%s2 + $0x78] sm:$0xff]
    %v1213 = vld [vmem:[%s3] sm:$0x1]
    %v1215 = vlaneseq
    %v1216 = vshrl.u32 %v1215, 7
    %v1217 = vsub.s32 0, %v1216
    %v1218 = vrot.slane %v1213, %v1217
    %vm1222 = vcmask 1041409
    %v1223 = vsel %vm1222, %v1196, %v1159
    %1225 = vmatprep.subr.mxu0 0.0
    %1226 = vmatpush1.msra.mxu0 %v1212
    %1227 = vmatprep.subr.mxu0 0.0
    %1228 = vmatpush1.msra.mxu0 %v1211
    %1229 = vmatprep.subr.mxu0 0.0
    %1230 = vmatpush1.msra.mxu0 %v1210
    %1231 = vmatprep.subr.mxu0 0.0
    %1232 = vmatpush1.msra.mxu0 %v1209
    %1233 = vmatprep.subr.mxu0 0.0
    %1234 = vmatpush1.msra.mxu0 %v1208
    %1235 = vmatprep.subr.mxu0 0.0
    %1236 = vmatpush1.msra.mxu0 %v1207
    %1237 = vmatprep.subr.mxu0 0.0
    %1238 = vmatpush1.msra.mxu0 %v1206
    %1239 = vmatprep.subr.mxu0 0.0
    %1240 = vmatpush1.msra.mxu0 %v1205
    %1241 = vmatprep.subr.mxu0 0.0
    %1242 = vmatpush1.msra.mxu0 %v1204
    %1243 = vmatprep.subr.mxu0 0.0
    %1244 = vmatpush1.msra.mxu0 %v1203
    %1245 = vmatprep.subr.mxu0 0.0
    %1246 = vmatpush1.msra.mxu0 %v1202
    %1247 = vmatprep.subr.mxu0 0.0
    %1248 = vmatpush1.msra.mxu0 %v1201
    %1249 = vmatprep.subr.mxu0 0.0
    %1250 = vmatpush1.msra.mxu0 %v1200
    %1251 = vmatprep.subr.mxu0 0.0
    %1252 = vmatpush1.msra.mxu0 %v1199
    %1253 = vmatprep.subr.mxu0 0.0
    %1254 = vmatpush1.msra.mxu0 %v1198
    %1255 = vmatprep.subr.mxu0 0.0
    %1256 = vmatpush1.msra.mxu0 %v1197
    %1257 = vmatprep.subr.mxu0 0.0
    %1258 = vmatpush2.msra.mxu0 0.0
    %1259 = vmatprep.subr.mxu0 0.0
    %1260 = vmatpush2.msra.mxu0 0.0
    %1261 = vmatprep.subr.mxu0 0.0
    %1262 = vmatpush2.msra.mxu0 0.0
    %1263 = vmatprep.subr.mxu0 0.0
    %1264 = vmatpush2.msra.mxu0 0.0
    %1265 = vmatprep.subr.mxu0 0.0
    %1266 = vmatpush2.msra.mxu0 0.0
    %1267 = vmatprep.subr.mxu0 0.0
    %1268 = vmatpush2.msra.mxu0 0.0
    %1269 = vmatprep.subr.mxu0 0.0
    %1270 = vmatpush2.msra.mxu0 0.0
    %1271 = vmatprep.subr.mxu0 0.0
    %1272 = vmatpush2.msra.mxu0 0.0
    %1273 = vmatprep.subr.mxu0 0.0
    %1274 = vmatpush2.msra.mxu0 0.0
    %1275 = vmatprep.subr.mxu0 0.0
    %1276 = vmatpush2.msra.mxu0 0.0
    %1277 = vmatprep.subr.mxu0 0.0
    %1278 = vmatpush2.msra.mxu0 0.0
    %1279 = vmatprep.subr.mxu0 0.0
    %1280 = vmatpush2.msra.mxu0 0.0
    %1281 = vmatprep.subr.mxu0 0.0
    %1282 = vmatpush2.msra.mxu0 0.0
    %1283 = vmatprep.subr.mxu0 0.0
    %1284 = vmatpush2.msra.mxu0 0.0
    %1285 = vmatprep.subr.mxu0 0.0
    %1286 = vmatpush2.msra.mxu0 0.0
    %1287 = vmatprep.subr.mxu0 0.0
    %1288 = vmatpush2.msra.mxu0 0.0
    %1289 = vmatprep.mubr.f32.mxu0 0.0
    %1290 = vmatmul.mubr.f32.gmra.mxu0 %v1223
    %v1291 = vpop.f32.mrf.mxu0
    %v1292 = vadd.f32 %v1218, %v1291
    %v1293 = vpop.f32.mrf.mxu0
    %1294 = vdwg.mxu0
    %v1295 = vxor.u32 %v1292, 2147483648
    %v1296 = vmul.f32 %v1295, 1.442695
    %v1297 = vpow.pop %v1296
    %v1298 = vadd.f32 %v1297, 1.0
    %v1299 = vrcp.pop %v1298
    %v1300 = vmul.f32 1.0, %v1299
    %v1301 = vmul.f32 %v1292, %v1300
    %1302 = vst [vmem:[#allocation2] sm:$0x3] %v1301
    %v1303 = vld [vmem:[%s4] sm:$0xff]
    %v1304 = vld [vmem:[%s4 + $0x8] sm:$0xff]
    %v1305 = vld [vmem:[%s4 + $0x10] sm:$0xff]
    %v1306 = vld [vmem:[%s4 + $0x18] sm:$0xff]
    %v1307 = vld [vmem:[%s4 + $0x20] sm:$0xff]
    %v1308 = vld [vmem:[%s4 + $0x28] sm:$0xff]
    %v1309 = vld [vmem:[%s4 + $0x30] sm:$0xff]
    %v1310 = vld [vmem:[%s4 + $0x38] sm:$0xff]
    %v1311 = vld [vmem:[%s4 + $0x40] sm:$0xff]
    %v1312 = vld [vmem:[%s4 + $0x48] sm:$0xff]
    %v1313 = vld [vmem:[%s4 + $0x50] sm:$0xff]
    %v1314 = vld [vmem:[%s4 + $0x58] sm:$0xff]
    %v1315 = vld [vmem:[%s4 + $0x60] sm:$0xff]
    %v1316 = vld [vmem:[%s4 + $0x68] sm:$0xff]
    %v1317 = vld [vmem:[%s4 + $0x70] sm:$0xff]
    %v1318 = vld [vmem:[%s4 + $0x78] sm:$0xff]
    %v1319 = vld [vmem:[%s5] sm:$0x1]
    %v1321 = vlaneseq
    %v1322 = vshrl.u32 %v1321, 7
    %v1323 = vsub.s32 0, %v1322
    %v1324 = vrot.slane %v1319, %v1323
    %1326 = vmatprep.subr.mxu0 0.0
    %1327 = vmatpush1.msra.mxu0 %v1318
    %1328 = vmatprep.subr.mxu0 0.0
    %1329 = vmatpush1.msra.mxu0 %v1317
    %1330 = vmatprep.subr.mxu0 0.0
    %1331 = vmatpush1.msra.mxu0 %v1316
    %1332 = vmatprep.subr.mxu0 0.0
    %1333 = vmatpush1.msra.mxu0 %v1315
    %1334 = vmatprep.subr.mxu0 0.0
    %1335 = vmatpush1.msra.mxu0 %v1314
    %1336 = vmatprep.subr.mxu0 0.0
    %1337 = vmatpush1.msra.mxu0 %v1313
    %1338 = vmatprep.subr.mxu0 0.0
    %1339 = vmatpush1.msra.mxu0 %v1312
    %1340 = vmatprep.subr.mxu0 0.0
    %1341 = vmatpush1.msra.mxu0 %v1311
    %1342 = vmatprep.subr.mxu0 0.0
    %1343 = vmatpush1.msra.mxu0 %v1310
    %1344 = vmatprep.subr.mxu0 0.0
    %1345 = vmatpush1.msra.mxu0 %v1309
    %1346 = vmatprep.subr.mxu0 0.0
    %1347 = vmatpush1.msra.mxu0 %v1308
    %1348 = vmatprep.subr.mxu0 0.0
    %1349 = vmatpush1.msra.mxu0 %v1307
    %1350 = vmatprep.subr.mxu0 0.0
    %1351 = vmatpush1.msra.mxu0 %v1306
    %1352 = vmatprep.subr.mxu0 0.0
    %1353 = vmatpush1.msra.mxu0 %v1305
    %1354 = vmatprep.subr.mxu0 0.0
    %1355 = vmatpush1.msra.mxu0 %v1304
    %1356 = vmatprep.subr.mxu0 0.0
    %1357 = vmatpush1.msra.mxu0 %v1303
    %1358 = vmatprep.subr.mxu0 0.0
    %1359 = vmatpush2.msra.mxu0 0.0
    %1360 = vmatprep.subr.mxu0 0.0
    %1361 = vmatpush2.msra.mxu0 0.0
    %1362 = vmatprep.subr.mxu0 0.0
    %1363 = vmatpush2.msra.mxu0 0.0
    %1364 = vmatprep.subr.mxu0 0.0
    %1365 = vmatpush2.msra.mxu0 0.0
    %1366 = vmatprep.subr.mxu0 0.0
    %1367 = vmatpush2.msra.mxu0 0.0
    %1368 = vmatprep.subr.mxu0 0.0
    %1369 = vmatpush2.msra.mxu0 0.0
    %1370 = vmatprep.subr.mxu0 0.0
    %1371 = vmatpush2.msra.mxu0 0.0
    %1372 = vmatprep.subr.mxu0 0.0
    %1373 = vmatpush2.msra.mxu0 0.0
    %1374 = vmatprep.subr.mxu0 0.0
    %1375 = vmatpush2.msra.mxu0 0.0
    %1376 = vmatprep.subr.mxu0 0.0
    %1377 = vmatpush2.msra.mxu0 0.0
    %1378 = vmatprep.subr.mxu0 0.0
    %1379 = vmatpush2.msra.mxu0 0.0
    %1380 = vmatprep.subr.mxu0 0.0
    %1381 = vmatpush2.msra.mxu0 0.0
    %1382 = vmatprep.subr.mxu0 0.0
    %1383 = vmatpush2.msra.mxu0 0.0
    %1384 = vmatprep.subr.mxu0 0.0
    %1385 = vmatpush2.msra.mxu0 0.0
    %1386 = vmatprep.subr.mxu0 0.0
    %1387 = vmatpush2.msra.mxu0 0.0
    %1388 = vmatprep.subr.mxu0 0.0
    %1389 = vmatpush2.msra.mxu0 0.0
    %1390 = vmatprep.mubr.f32.mxu0 0.0
    %1391 = vmatmul.mubr.f32.gmra.mxu0 %v1301
    %v1392 = vpop.f32.mrf.mxu0
    %v1393 = vadd.f32 %v1324, %v1392
    %v1394 = vpop.f32.mrf.mxu0
    %1395 = vdwg.mxu0
    %1396 = vst [vmem:[#allocation4] sm:$0x3] %v1393
    // Predicated region
    $region26: #{clr_cls_forward.1} parent=1 // pred_check
      _
    $region27: #{clr_cls_forward.1} parent=1 // pred_check_branch
      %1398 = sbr.rel (0) target = $region29
    $region28: #{clr_cls_forward.1} parent=1 // pred_region
      %s1400 = ssub.s32 32, 32
      %1401 = vsyncadd [#allocation3], %s1400
      %s1403 = sshll.u32 [#allocation2], 4
      %s1404 = int_to_ptr.vmem [resolvable:$true] %s1403
      %1406 = dma.vmem_to_hbm [thread:$0]  %s1404, 32, %s6, [#allocation3]
    $region29: #{clr_cls_forward.1} parent=1 // pred_fallthru
      _
    // Predicated region
    $region30: #{clr_cls_forward.1} parent=1 // pred_check
      _
    $region31: #{clr_cls_forward.1} parent=1 // pred_check_branch
      %1408 = sbr.rel (0) target = $region33
    $region32: #{clr_cls_forward.1} parent=1 // pred_region
      %s1410 = ssub.s32 32, 32
      %1411 = vsyncadd [#allocation5], %s1410
      %s1413 = sshll.u32 [#allocation4], 4
      %s1414 = int_to_ptr.vmem [resolvable:$true] %s1413
      %1416 = dma.vmem_to_hbm [thread:$0]  %s1414, 32, %s7, [#allocation5]
    $region33: #{clr_cls_forward.1} parent=1 // pred_fallthru
      _
    // Predicated region
    $region34: #{clr_cls_forward.1} parent=1 // pred_check
      _
    $region35: #{clr_cls_forward.1} parent=1 // pred_check_branch
      %1418 = sbr.rel (0) target = $region37
    $region36: #{clr_cls_forward.1} parent=1 // pred_region
      %1419 = dma.done [#allocation3], 32
    $region37: #{clr_cls_forward.1} parent=1 // pred_fallthru
      _
    // Predicated region
    $region38: #{clr_cls_forward.1} parent=1 // pred_check
      _
    $region39: #{clr_cls_forward.1} parent=1 // pred_check_branch
      %1421 = sbr.rel (0) target = $region41
    $region40: #{clr_cls_forward.1} parent=1 // pred_region
      %1422 = dma.done [#allocation5], 32
    $region41: #{clr_cls_forward.1} parent=1 // pred_fallthru
      _
    %1423 = vsyncpa [#allocation3], 1
    %1424 = vsyncpa [#allocation5], 1

</llo_original>
